<compile_context>
chip_gen: v5e
topology: v5e:2x2
jax: 0.10.0
libtpu: 0.0.40
codegen_flags: <defaults>
</compile_context>

<pallas_src>
import functools

import jax
import jax.numpy as jnp
from jax import lax
from jax.experimental import pallas as pl
from jax.experimental.pallas import tpu as pltpu

BN_EPS = 1e-5
LANE = 128


def _round_up(v, m):
  return (v + m - 1) // m * m


def depthwise_separable_conv2d(x, w_dw, b_dw, w_pw, b_pw, bn1=None, bn2=None,
                               *, stride, tile_rows=None,
                               matmul_dtype=jnp.bfloat16):
  """Depthwise-separable conv block with eval-mode BatchNorm.

  x:    (N, Cin, H, W) float32 NCHW (PyTorch convention)
  w_dw: (Cin, 1, 3, 3) depthwise weight, b_dw: (Cin,)
  w_pw: (Cout, Cin, 1, 1) pointwise weight, b_pw: (Cout,)
  bn1/bn2: optional (gamma, beta, running_mean, running_var); identity if None.
  Returns (N, Cout, Ho, Wo) float32.
  """
  N, Cin, H, W = x.shape
  Cout = w_pw.shape[0]
  s = int(stride)
  Ho = (H - 3) // s + 1
  Wo = (W - 3) // s + 1

  # ---------------- tiling geometry ----------------
  if tile_rows is None:
    tile_rows = max(1, 512 // max(Wo, 1))       # ~512 output positions / tile
  TR = max(1, min(int(tile_rows), Ho))          # output rows per grid step
  T = -(-Ho // TR)                              # number of row tiles
  Ho_pad = T * TR
  HALO = 2 // s                                 # extra within-phase rows/cols
  TRH = TR + HALO                               # input rows/phase/tile
  SS = s * s                                    # number of stride phases
  Hp = Ho_pad + HALO                            # within-phase rows kept
  Wp = Wo + HALO                                # within-phase cols kept
  Cin_p = _round_up(Cin, LANE)                  # lane-dense input channels
  Cout_p = _round_up(Cout, LANE)                # lane-dense output channels

  # ---------------- glue: ~1x relayout (no 9x im2col) ----------------
  x_nhwc = jnp.transpose(x, (0, 2, 3, 1)).astype(jnp.float32)
  H_t, W_t = Hp * s, Wp * s
  x_nhwc = x_nhwc[:, :min(H, H_t), :min(W, W_t), :]
  x_nhwc = jnp.pad(x_nhwc, ((0, 0), (0, H_t - x_nhwc.shape[1]),
                            (0, W_t - x_nhwc.shape[2]), (0, Cin_p - Cin)))
  # Stride-phase layout: x_ph[n, ph*s+pw, i, j, c] == x[n, i*s+ph, j*s+pw, c]
  x_ph = x_nhwc.reshape(N, Hp, s, Wp, s, Cin_p)
  x_ph = jnp.transpose(x_ph, (0, 2, 4, 1, 3, 5)).reshape(N, SS, Hp, Wp, Cin_p)
  # Halo'd row slabs per spatial tile (duplicates only HALO rows per tile).
  slabs = [x_ph[:, :, t * TR:t * TR + TRH] for t in range(T)]
  x_tiles = jnp.stack(slabs, axis=1).reshape(N * T, SS * TRH, Wp, Cin_p)

  # ---------------- glue: fold BN scales into the weights ----------------
  f32 = jnp.float32
  if bn1 is None:
    g1, be1 = jnp.ones((Cin,), f32), jnp.zeros((Cin,), f32)
    m1, v1 = jnp.zeros((Cin,), f32), jnp.ones((Cin,), f32)
  else:
    g1, be1, m1, v1 = [a.astype(f32) for a in bn1]
  if bn2 is None:
    g2, be2 = jnp.ones((Cout,), f32), jnp.zeros((Cout,), f32)
    m2, v2 = jnp.zeros((Cout,), f32), jnp.ones((Cout,), f32)
  else:
    g2, be2, m2, v2 = [a.astype(f32) for a in bn2]

  scale1 = g1 * lax.rsqrt(v1 + BN_EPS)
  scale2 = g2 * lax.rsqrt(v2 + BN_EPS)

  # depthwise weight (Cin,1,3,3) -> (9, Cin), BN1 scale folded per channel.
  wd = jnp.transpose(w_dw.reshape(Cin, 9), (1, 0)) * scale1[None, :]
  wd = jnp.pad(wd, ((0, 0), (0, Cin_p - Cin))).reshape(9, 1, Cin_p)
  b1 = be1 + (b_dw.astype(f32) - m1) * scale1
  b1 = jnp.pad(b1, (0, Cin_p - Cin)).reshape(1, 1, Cin_p)

  # pointwise weight (Cout,Cin,1,1) -> (Cin, Cout), BN2 scale folded per col.
  wp = jnp.transpose(w_pw[:, :, 0, 0], (1, 0)) * scale2[None, :]
  wp = jnp.pad(wp, ((0, Cin_p - Cin), (0, Cout_p - Cout))).astype(matmul_dtype)
  b2 = be2 + (b_pw.astype(f32) - m2) * scale2
  b2 = jnp.pad(b2, (0, Cout_p - Cout)).reshape(1, Cout_p)

  # ---------------- Pallas kernel ----------------
  def kernel(x_ref, wd_ref, b1_ref, wp_ref, b2_ref, out_ref, h_ref):
    # x_ref:  (1, SS*TRH, Wp, Cin_p) halo'd, phase-decomposed input tile
    # wd_ref: (9, 1, Cin_p)   depthwise taps (BN1 scale folded in)
    # b1_ref: (1, 1, Cin_p)   BN1 bias (conv bias folded in)
    # wp_ref: (Cin_p, Cout_p) pointwise weight (BN2 scale folded in)
    # b2_ref: (1, Cout_p)     BN2 bias (conv bias folded in)
    # out_ref:(1, TR*Wo, Cout_p)
    # h_ref:  (TR*Wo, Cin_p)  f32 scratch holding the depthwise output
    wdv = wd_ref[...]                                  # (9, 1, Cin_p)
    acc = None
    for kh in range(3):                                # 9-tap depthwise MAC
      for kw in range(3):
        k = kh * 3 + kw
        ph = (kh % s) * s + (kw % s)                   # stride phase
        r0 = ph * TRH + kh // s                        # row offset in slab
        c0 = kw // s                                   # col offset in phase
        tap = x_ref[0, r0:r0 + TR, c0:c0 + Wo, :]      # (TR, Wo, Cin_p)
        term = tap * wdv[k:k + 1]                      # bcast (1,1,Cin_p)
        acc = term if acc is None else acc + term
    h = jnp.maximum(acc + b1_ref[...], 0.0)            # BN1 bias + ReLU
    for r in range(TR):                                # flatten rows for MXU
      h_ref[r * Wo:(r + 1) * Wo, :] = h[r]
    y = jnp.dot(h_ref[...].astype(wp_ref.dtype), wp_ref[...],
                preferred_element_type=jnp.float32)    # 1x1 conv on the MXU
    out_ref[0] = jnp.maximum(y + b2_ref[...], 0.0).astype(out_ref.dtype)

  # VMEM budget: double-buffered in/out tiles + weights + scratch; cap at
  # 48 MiB so the same sizing is safe on v7x (64 MiB physical VMEM).
  mm_isize = jnp.dtype(matmul_dtype).itemsize
  need = (2 * (SS * TRH * Wp * Cin_p * 4 + TR * Wo * Cout_p * 4)
          + 2 * (10 * Cin_p * 4 + Cin_p * Cout_p * mm_isize + Cout_p * 4)
          + TR * Wo * Cin_p * 4)
  vmem_limit = int(min(48 * 2**20, max(32 * 2**20, 2 * need)))

  out = pl.pallas_call(
      kernel,
      out_shape=jax.ShapeDtypeStruct((N * T, TR * Wo, Cout_p), jnp.float32),
      grid=(N * T,),
      in_specs=[
          pl.BlockSpec((1, SS * TRH, Wp, Cin_p), lambda i: (i, 0, 0, 0)),
          pl.BlockSpec((9, 1, Cin_p), lambda i: (0, 0, 0)),
          pl.BlockSpec((1, 1, Cin_p), lambda i: (0, 0, 0)),
          pl.BlockSpec((Cin_p, Cout_p), lambda i: (0, 0)),
          pl.BlockSpec((1, Cout_p), lambda i: (0, 0)),
      ],
      out_specs=pl.BlockSpec((1, TR * Wo, Cout_p), lambda i: (i, 0, 0)),
      scratch_shapes=[pltpu.VMEM((TR * Wo, Cin_p), jnp.float32)],
      compiler_params=pltpu.CompilerParams(
          dimension_semantics=("parallel",),
          vmem_limit_bytes=vmem_limit),
  )(x_tiles, wd, b1, wp, b2)

  # ---------------- glue: crop padding, back to NCHW ----------------
  out = out.reshape(N, Ho_pad, Wo, Cout_p)[:, :Ho, :, :Cout]
  return jnp.transpose(out, (0, 3, 1, 2))


def _reference(x, w_dw, b_dw, w_pw, b_pw, bn1, bn2, stride):
  """Pure-JAX reference of the same (eval-mode BN) forward pass."""
  Cin = x.shape[1]
  g1, be1, m1, v1 = bn1
  g2, be2, m2, v2 = bn2
  dw = lax.conv_general_dilated(
      x, w_dw, window_strides=(stride, stride), padding="VALID",
      feature_group_count=Cin, dimension_numbers=("NCHW", "OIHW", "NCHW"))
  dw = dw + b_dw[None, :, None, None]
  dw = ((dw - m1[None, :, None, None])
        * lax.rsqrt(v1 + BN_EPS)[None, :, None, None]
        * g1[None, :, None, None] + be1[None, :, None, None])
  dw = jnp.maximum(dw, 0.0)
  pw = lax.conv_general_dilated(
      dw, w_pw, window_strides=(1, 1), padding="VALID",
      dimension_numbers=("NCHW", "OIHW", "NCHW"))
  pw = pw + b_pw[None, :, None, None]
  pw = ((pw - m2[None, :, None, None])
        * lax.rsqrt(v2 + BN_EPS)[None, :, None, None]
        * g2[None, :, None, None] + be2[None, :, None, None])
  return jnp.maximum(pw, 0.0)


if __name__ == "__main__":
  key = jax.random.PRNGKey(0)
  ks = jax.random.split(key, 13)

  N, Cin, H, W = 2, 4, 16, 16
  Cout = 8

  x = jax.random.normal(ks[0], (N, Cin, H, W), jnp.float32)
  w_dw = jax.random.normal(ks[1], (Cin, 1, 3, 3), jnp.float32) * 0.2
  b_dw = jax.random.normal(ks[2], (Cin,), jnp.float32) * 0.1
  w_pw = jax.random.normal(ks[3], (Cout, Cin, 1, 1), jnp.float32) * 0.2
  b_pw = jax.random.normal(ks[4], (Cout,), jnp.float32) * 0.1
  # Non-trivial eval-mode BatchNorm parameters / running statistics.
  bn1 = (1.0 + 0.25 * jax.random.uniform(ks[5], (Cin,), jnp.float32, -1, 1),
         0.1 * jax.random.normal(ks[6], (Cin,), jnp.float32),
         0.1 * jax.random.normal(ks[7], (Cin,), jnp.float32),
         0.5 + jax.random.uniform(ks[8], (Cin,), jnp.float32))
  bn2 = (1.0 + 0.25 * jax.random.uniform(ks[9], (Cout,), jnp.float32, -1, 1),
         0.1 * jax.random.normal(ks[10], (Cout,), jnp.float32),
         0.1 * jax.random.normal(ks[11], (Cout,), jnp.float32),
         0.5 + jax.random.uniform(ks[12], (Cout,), jnp.float32))

  configs = [
      # multi-tile spatial grid + padded last tile, f32 matmul
      dict(stride=2, tile_rows=4, matmul_dtype=jnp.float32, tol=2e-2),
      # auto tile size, bf16 MXU path (f32 accumulation)
      dict(stride=2, tile_rows=None, matmul_dtype=jnp.bfloat16, tol=5e-2),
      # stride=1 path (2-row/col halo), multi-tile
      dict(stride=1, tile_rows=3, matmul_dtype=jnp.float32, tol=2e-2),
  ]
  for cfg in configs:
    fn = jax.jit(functools.partial(
        depthwise_separable_conv2d, stride=cfg["stride"],
        tile_rows=cfg["tile_rows"], matmul_dtype=cfg["matmul_dtype"]))
    out = jax.block_until_ready(fn(x, w_dw, b_dw, w_pw, b_pw, bn1, bn2))
    ref = _reference(x, w_dw, b_dw, w_pw, b_pw, bn1, bn2, cfg["stride"])
    assert out.shape == ref.shape, (out.shape, ref.shape)
    max_err = float(jnp.max(jnp.abs(out - ref)))
    assert jnp.allclose(out, ref, atol=cfg["tol"], rtol=cfg["tol"]), (
        "mismatch vs reference", cfg["stride"], cfg["tile_rows"], max_err)

  print("KERNEL_OK")
</pallas_src>

<mosaic_0001>
module attributes {stable_mosaic.version = 11 : i64} {
  func.func @kernel(%arg0: i32, %arg1: memref<1x20x8x128xf32, #tpu.memory_space<vmem>>, %arg2: memref<9x1x128xf32, #tpu.memory_space<vmem>>, %arg3: memref<1x1x128xf32, #tpu.memory_space<vmem>>, %arg4: memref<128x128xf32, #tpu.memory_space<vmem>>, %arg5: memref<1x128xf32, #tpu.memory_space<vmem>>, %arg6: memref<1x28x128xf32, #tpu.memory_space<vmem>>, %arg7: memref<28x128xf32, #tpu.memory_space<vmem>>) attributes {dimension_semantics = [#tpu.dimension_semantics<parallel>], iteration_bounds = array<i64: 4>, scalar_prefetch = 0 : i64, scratch_operands = 1 : i64, tpu.core_type = #tpu.core_type<tc>, window_params = [{transform_indices = @transform_0, window_bounds = array<i64: 1, 20, 8, 128>}, {pipeline_mode = #tpu.pipeline_mode<synchronous>, transform_indices = @transform_1, window_bounds = array<i64: 9, 1, 128>}, {pipeline_mode = #tpu.pipeline_mode<synchronous>, transform_indices = @transform_2, window_bounds = array<i64: 1, 1, 128>}, {pipeline_mode = #tpu.pipeline_mode<synchronous>, transform_indices = @transform_3, window_bounds = array<i64: 128, 128>}, {pipeline_mode = #tpu.pipeline_mode<synchronous>, transform_indices = @transform_4, window_bounds = array<i64: 1, 128>}, {transform_indices = @transform_5, window_bounds = array<i64: 1, 28, 128>}]} {
    %c0 = arith.constant 0 : index
    %c0_0 = arith.constant 0 : index
    %c0_1 = arith.constant 0 : index
    %0 = vector.load %arg2[%c0, %c0_0, %c0_1] : memref<9x1x128xf32, #tpu.memory_space<vmem>>, vector<9x1x128xf32>
    %c0_2 = arith.constant 0 : index
    %c0_3 = arith.constant 0 : index
    %c0_4 = arith.constant 0 : index
    %c0_5 = arith.constant 0 : index
    %1 = vector.load %arg1[%c0_2, %c0_3, %c0_4, %c0_5] : memref<1x20x8x128xf32, #tpu.memory_space<vmem>>, vector<1x4x7x128xf32>
    %2 = vector.shape_cast %1 : vector<1x4x7x128xf32> to vector<4x7x128xf32>
    %3 = vector.extract_strided_slice %0 {offsets = [0, 0, 0], sizes = [1, 1, 128], strides = [1, 1, 1]} : vector<9x1x128xf32> to vector<1x1x128xf32>
    %4 = vector.broadcast %3 : vector<1x1x128xf32> to vector<4x7x128xf32>
    %5 = arith.mulf %2, %4 : vector<4x7x128xf32>
    %c0_6 = arith.constant 0 : index
    %c5 = arith.constant 5 : index
    %c0_7 = arith.constant 0 : index
    %c0_8 = arith.constant 0 : index
    %6 = vector.load %arg1[%c0_6, %c5, %c0_7, %c0_8] : memref<1x20x8x128xf32, #tpu.memory_space<vmem>>, vector<1x4x7x128xf32>
    %7 = vector.shape_cast %6 : vector<1x4x7x128xf32> to vector<4x7x128xf32>
    %8 = vector.extract_strided_slice %0 {offsets = [1, 0, 0], sizes = [1, 1, 128], strides = [1, 1, 1]} : vector<9x1x128xf32> to vector<1x1x128xf32>
    %9 = vector.broadcast %8 : vector<1x1x128xf32> to vector<4x7x128xf32>
    %10 = arith.mulf %7, %9 : vector<4x7x128xf32>
    %11 = arith.addf %5, %10 : vector<4x7x128xf32>
    %c0_9 = arith.constant 0 : index
    %c0_10 = arith.constant 0 : index
    %c1 = arith.constant 1 : index
    %c0_11 = arith.constant 0 : index
    %12 = vector.load %arg1[%c0_9, %c0_10, %c1, %c0_11] : memref<1x20x8x128xf32, #tpu.memory_space<vmem>>, vector<1x4x7x128xf32>
    %13 = vector.shape_cast %12 : vector<1x4x7x128xf32> to vector<4x7x128xf32>
    %14 = vector.extract_strided_slice %0 {offsets = [2, 0, 0], sizes = [1, 1, 128], strides = [1, 1, 1]} : vector<9x1x128xf32> to vector<1x1x128xf32>
    %15 = vector.broadcast %14 : vector<1x1x128xf32> to vector<4x7x128xf32>
    %16 = arith.mulf %13, %15 : vector<4x7x128xf32>
    %17 = arith.addf %11, %16 : vector<4x7x128xf32>
    %c0_12 = arith.constant 0 : index
    %c10 = arith.constant 10 : index
    %c0_13 = arith.constant 0 : index
    %c0_14 = arith.constant 0 : index
    %18 = vector.load %arg1[%c0_12, %c10, %c0_13, %c0_14] : memref<1x20x8x128xf32, #tpu.memory_space<vmem>>, vector<1x4x7x128xf32>
    %19 = vector.shape_cast %18 : vector<1x4x7x128xf32> to vector<4x7x128xf32>
    %20 = vector.extract_strided_slice %0 {offsets = [3, 0, 0], sizes = [1, 1, 128], strides = [1, 1, 1]} : vector<9x1x128xf32> to vector<1x1x128xf32>
    %21 = vector.broadcast %20 : vector<1x1x128xf32> to vector<4x7x128xf32>
    %22 = arith.mulf %19, %21 : vector<4x7x128xf32>
    %23 = arith.addf %17, %22 : vector<4x7x128xf32>
    %c0_15 = arith.constant 0 : index
    %c15 = arith.constant 15 : index
    %c0_16 = arith.constant 0 : index
    %c0_17 = arith.constant 0 : index
    %24 = vector.load %arg1[%c0_15, %c15, %c0_16, %c0_17] : memref<1x20x8x128xf32, #tpu.memory_space<vmem>>, vector<1x4x7x128xf32>
    %25 = vector.shape_cast %24 : vector<1x4x7x128xf32> to vector<4x7x128xf32>
    %26 = vector.extract_strided_slice %0 {offsets = [4, 0, 0], sizes = [1, 1, 128], strides = [1, 1, 1]} : vector<9x1x128xf32> to vector<1x1x128xf32>
    %27 = vector.broadcast %26 : vector<1x1x128xf32> to vector<4x7x128xf32>
    %28 = arith.mulf %25, %27 : vector<4x7x128xf32>
    %29 = arith.addf %23, %28 : vector<4x7x128xf32>
    %c0_18 = arith.constant 0 : index
    %c10_19 = arith.constant 10 : index
    %c1_20 = arith.constant 1 : index
    %c0_21 = arith.constant 0 : index
    %30 = vector.load %arg1[%c0_18, %c10_19, %c1_20, %c0_21] : memref<1x20x8x128xf32, #tpu.memory_space<vmem>>, vector<1x4x7x128xf32>
    %31 = vector.shape_cast %30 : vector<1x4x7x128xf32> to vector<4x7x128xf32>
    %32 = vector.extract_strided_slice %0 {offsets = [5, 0, 0], sizes = [1, 1, 128], strides = [1, 1, 1]} : vector<9x1x128xf32> to vector<1x1x128xf32>
    %33 = vector.broadcast %32 : vector<1x1x128xf32> to vector<4x7x128xf32>
    %34 = arith.mulf %31, %33 : vector<4x7x128xf32>
    %35 = arith.addf %29, %34 : vector<4x7x128xf32>
    %c0_22 = arith.constant 0 : index
    %c1_23 = arith.constant 1 : index
    %c0_24 = arith.constant 0 : index
    %c0_25 = arith.constant 0 : index
    %36 = vector.load %arg1[%c0_22, %c1_23, %c0_24, %c0_25] : memref<1x20x8x128xf32, #tpu.memory_space<vmem>>, vector<1x4x7x128xf32>
    %37 = vector.shape_cast %36 : vector<1x4x7x128xf32> to vector<4x7x128xf32>
    %38 = vector.extract_strided_slice %0 {offsets = [6, 0, 0], sizes = [1, 1, 128], strides = [1, 1, 1]} : vector<9x1x128xf32> to vector<1x1x128xf32>
    %39 = vector.broadcast %38 : vector<1x1x128xf32> to vector<4x7x128xf32>
    %40 = arith.mulf %37, %39 : vector<4x7x128xf32>
    %41 = arith.addf %35, %40 : vector<4x7x128xf32>
    %c0_26 = arith.constant 0 : index
    %c6 = arith.constant 6 : index
    %c0_27 = arith.constant 0 : index
    %c0_28 = arith.constant 0 : index
    %42 = vector.load %arg1[%c0_26, %c6, %c0_27, %c0_28] : memref<1x20x8x128xf32, #tpu.memory_space<vmem>>, vector<1x4x7x128xf32>
    %43 = vector.shape_cast %42 : vector<1x4x7x128xf32> to vector<4x7x128xf32>
    %44 = vector.extract_strided_slice %0 {offsets = [7, 0, 0], sizes = [1, 1, 128], strides = [1, 1, 1]} : vector<9x1x128xf32> to vector<1x1x128xf32>
    %45 = vector.broadcast %44 : vector<1x1x128xf32> to vector<4x7x128xf32>
    %46 = arith.mulf %43, %45 : vector<4x7x128xf32>
    %47 = arith.addf %41, %46 : vector<4x7x128xf32>
    %c0_29 = arith.constant 0 : index
    %c1_30 = arith.constant 1 : index
    %c1_31 = arith.constant 1 : index
    %c0_32 = arith.constant 0 : index
    %48 = vector.load %arg1[%c0_29, %c1_30, %c1_31, %c0_32] : memref<1x20x8x128xf32, #tpu.memory_space<vmem>>, vector<1x4x7x128xf32>
    %49 = vector.shape_cast %48 : vector<1x4x7x128xf32> to vector<4x7x128xf32>
    %50 = vector.extract_strided_slice %0 {offsets = [8, 0, 0], sizes = [1, 1, 128], strides = [1, 1, 1]} : vector<9x1x128xf32> to vector<1x1x128xf32>
    %51 = vector.broadcast %50 : vector<1x1x128xf32> to vector<4x7x128xf32>
    %52 = arith.mulf %49, %51 : vector<4x7x128xf32>
    %53 = arith.addf %47, %52 : vector<4x7x128xf32>
    %c0_33 = arith.constant 0 : index
    %c0_34 = arith.constant 0 : index
    %c0_35 = arith.constant 0 : index
    %54 = vector.load %arg3[%c0_33, %c0_34, %c0_35] : memref<1x1x128xf32, #tpu.memory_space<vmem>>, vector<1x1x128xf32>
    %55 = vector.broadcast %54 : vector<1x1x128xf32> to vector<4x7x128xf32>
    %56 = arith.addf %53, %55 : vector<4x7x128xf32>
    %cst = arith.constant 0.000000e+00 : f32
    %57 = vector.broadcast %cst : f32 to vector<4x7x128xf32>
    %58 = arith.maximumf %56, %57 : vector<4x7x128xf32>
    %59 = vector.extract_strided_slice %58 {offsets = [0, 0, 0], sizes = [1, 7, 128], strides = [1, 1, 1]} : vector<4x7x128xf32> to vector<1x7x128xf32>
    %60 = vector.shape_cast %59 : vector<1x7x128xf32> to vector<7x128xf32>
    %c0_36 = arith.constant 0 : index
    %c0_37 = arith.constant 0 : index
    %61 = vector.load %arg7[%c0_36, %c0_37] : memref<28x128xf32, #tpu.memory_space<vmem>>, vector<7x128xf32>
    tpu.vector_store %arg7[%c0_36, %c0_37], %60 {strides = array<i32>} : memref<28x128xf32, #tpu.memory_space<vmem>>, vector<7x128xf32>,
    %62 = vector.extract_strided_slice %58 {offsets = [1, 0, 0], sizes = [1, 7, 128], strides = [1, 1, 1]} : vector<4x7x128xf32> to vector<1x7x128xf32>
    %63 = vector.shape_cast %62 : vector<1x7x128xf32> to vector<7x128xf32>
    %c7 = arith.constant 7 : index
    %c0_38 = arith.constant 0 : index
    %64 = vector.load %arg7[%c7, %c0_38] : memref<28x128xf32, #tpu.memory_space<vmem>>, vector<7x128xf32>
    tpu.vector_store %arg7[%c7, %c0_38], %63 {strides = array<i32>} : memref<28x128xf32, #tpu.memory_space<vmem>>, vector<7x128xf32>,
    %65 = vector.extract_strided_slice %58 {offsets = [2, 0, 0], sizes = [1, 7, 128], strides = [1, 1, 1]} : vector<4x7x128xf32> to vector<1x7x128xf32>
    %66 = vector.shape_cast %65 : vector<1x7x128xf32> to vector<7x128xf32>
    %c14 = arith.constant 14 : index
    %c0_39 = arith.constant 0 : index
    %67 = vector.load %arg7[%c14, %c0_39] : memref<28x128xf32, #tpu.memory_space<vmem>>, vector<7x128xf32>
    tpu.vector_store %arg7[%c14, %c0_39], %66 {strides = array<i32>} : memref<28x128xf32, #tpu.memory_space<vmem>>, vector<7x128xf32>,
    %68 = vector.extract_strided_slice %58 {offsets = [3, 0, 0], sizes = [1, 7, 128], strides = [1, 1, 1]} : vector<4x7x128xf32> to vector<1x7x128xf32>
    %69 = vector.shape_cast %68 : vector<1x7x128xf32> to vector<7x128xf32>
    %c21 = arith.constant 21 : index
    %c0_40 = arith.constant 0 : index
    %70 = vector.load %arg7[%c21, %c0_40] : memref<28x128xf32, #tpu.memory_space<vmem>>, vector<7x128xf32>
    tpu.vector_store %arg7[%c21, %c0_40], %69 {strides = array<i32>} : memref<28x128xf32, #tpu.memory_space<vmem>>, vector<7x128xf32>,
    %c0_41 = arith.constant 0 : index
    %c0_42 = arith.constant 0 : index
    %71 = vector.load %arg7[%c0_41, %c0_42] : memref<28x128xf32, #tpu.memory_space<vmem>>, vector<28x128xf32>
    %c0_43 = arith.constant 0 : index
    %c0_44 = arith.constant 0 : index
    %72 = vector.load %arg4[%c0_43, %c0_44] : memref<128x128xf32, #tpu.memory_space<vmem>>, vector<128x128xf32>
    %cst_45 = arith.constant dense<0.000000e+00> : vector<28x128xf32>
    %73 = tpu.matmul %71, %72, %cst_45 {dimension_numbers = #tpu.dot_dimension_numbers<[1], [0], [0], [1], [0, 0, 1, 1], [], []>} : vector<28x128xf32>, vector<128x128xf32>, vector<28x128xf32> -> vector<28x128xf32>
    %c0_46 = arith.constant 0 : index
    %c0_47 = arith.constant 0 : index
    %74 = vector.load %arg5[%c0_46, %c0_47] : memref<1x128xf32, #tpu.memory_space<vmem>>, vector<1x128xf32>
    %75 = vector.broadcast %74 : vector<1x128xf32> to vector<28x128xf32>
    %76 = arith.addf %73, %75 : vector<28x128xf32>
    %cst_48 = arith.constant 0.000000e+00 : f32
    %77 = vector.broadcast %cst_48 : f32 to vector<28x128xf32>
    %78 = arith.maximumf %76, %77 : vector<28x128xf32>
    %c0_49 = arith.constant 0 : index
    %c0_50 = arith.constant 0 : index
    %c0_51 = arith.constant 0 : index
    %79 = vector.load %arg6[%c0_49, %c0_50, %c0_51] : memref<1x28x128xf32, #tpu.memory_space<vmem>>, vector<1x28x128xf32>
    %80 = vector.shape_cast %79 : vector<1x28x128xf32> to vector<28x128xf32>
    %81 = vector.shape_cast %78 : vector<28x128xf32> to vector<1x28x128xf32>
    tpu.vector_store %arg6[%c0_49, %c0_50, %c0_51], %81 {strides = array<i32>} : memref<1x28x128xf32, #tpu.memory_space<vmem>>, vector<1x28x128xf32>,
    return
  }
  func.func @transform_0(%arg0: i32) -> (i32, i32, i32, i32) {
    %c0_i32 = arith.constant 0 : i32
    %c0_i32_0 = arith.constant 0 : i32
    %c0_i32_1 = arith.constant 0 : i32
    %c0_i32_2 = arith.constant 0 : i32
    return %arg0, %c0_i32, %c0_i32_0, %c0_i32_1 : i32, i32, i32, i32
  }
  func.func @transform_1(%arg0: i32) -> (i32, i32, i32) {
    %c0_i32 = arith.constant 0 : i32
    %c0_i32_0 = arith.constant 0 : i32
    %c0_i32_1 = arith.constant 0 : i32
    %c0_i32_2 = arith.constant 0 : i32
    return %c0_i32, %c0_i32_0, %c0_i32_1 : i32, i32, i32
  }
  func.func @transform_2(%arg0: i32) -> (i32, i32, i32) {
    %c0_i32 = arith.constant 0 : i32
    %c0_i32_0 = arith.constant 0 : i32
    %c0_i32_1 = arith.constant 0 : i32
    %c0_i32_2 = arith.constant 0 : i32
    return %c0_i32, %c0_i32_0, %c0_i32_1 : i32, i32, i32
  }
  func.func @transform_3(%arg0: i32) -> (i32, i32) {
    %c0_i32 = arith.constant 0 : i32
    %c0_i32_0 = arith.constant 0 : i32
    %c0_i32_1 = arith.constant 0 : i32
    return %c0_i32, %c0_i32_0 : i32, i32
  }
  func.func @transform_4(%arg0: i32) -> (i32, i32) {
    %c0_i32 = arith.constant 0 : i32
    %c0_i32_0 = arith.constant 0 : i32
    %c0_i32_1 = arith.constant 0 : i32
    return %c0_i32, %c0_i32_0 : i32, i32
  }
  func.func @transform_5(%arg0: i32) -> (i32, i32, i32) {
    %c0_i32 = arith.constant 0 : i32
    %c0_i32_0 = arith.constant 0 : i32
    %c0_i32_1 = arith.constant 0 : i32
    return %arg0, %c0_i32, %c0_i32_0 : i32, i32, i32
  }
}

</mosaic_0001>

<llo_original>
// kernel: depthwise_separable_conv2d.1
$region0: #{depthwise_separable_conv2d.1}
  #allocation0 [shape = 'u32[]', space=smem, size = 0x4, offset = 0x4, fixed_abs, tag = 'smem constant byte address 0x4 - core index']
  #allocation1 [shape = 'u32[72,128]{1,0:T(1,128)}', space=vmem, size = 0x9000, scoped, tag = 'internal scratch']
  #allocation2 [shape = 'f32[28,128]{1,0:T(8,128)}', space=vmem, size = 0x4000, scoped, tag = 'scratch operand']
  %s0 = inlined_call_operand.vmem [shape: f32[4,20,8,128], index: 0, kind: input, shape index: {}]
  %s1 = inlined_call_operand.vmem [shape: f32[9,1,128], index: 1, kind: input, shape index: {}]
  %s2 = inlined_call_operand.vmem [shape: f32[1,1,128], index: 2, kind: input, shape index: {}]
  %s3 = inlined_call_operand.vmem [shape: f32[128,128], index: 3, kind: input, shape index: {}]
  %s4 = inlined_call_operand.vmem [shape: f32[1,128], index: 4, kind: input, shape index: {}]
  %s5 = inlined_call_operand.vmem [shape: f32[4,28,128], index: 5, kind: output, shape index: {}]
  %s6 = sld [smem:[#allocation0]]
  $region53: #{depthwise_separable_conv2d.1} parent=0
    _
  %s8 = ssub.s32 1, %s6
  %s9 = scalar_select 0, %s8, %s6
  loop: start=0, step=1, limit=6
  $region2: #{depthwise_separable_conv2d.1} parent=0 // loop_pre_header
    _
  $region3: #{depthwise_separable_conv2d.1} parent=0 // loop_header
    %s11 = sphi 0, %s15
    %p12 = scmp.ge.s32.totalorder %s11, 6
    %s21 = sphi 0, %s23
    %s24 = sphi 0, %s21
    %s25 = sphi 0, %s24
    %s41 = sphi 0, %s25
    %s45 = sphi 0, %s45
    %s47 = sphi 0, %s45
    %s48 = sphi 0, %s47
    %s62 = sphi 0, %s48
    %s66 = sphi 0, %s66
    %s68 = sphi 0, %s66
    %s69 = sphi 0, %s68
    %s83 = sphi 0, %s69
    %s87 = sphi 0, %s87
    %s89 = sphi 0, %s87
    %s90 = sphi 0, %s89
    %s104 = sphi 0, %s90
    %s108 = sphi 0, %s108
    %s110 = sphi 0, %s108
    %s111 = sphi 0, %s110
    %s125 = sphi 0, %s111
    %s131 = sphi 0, %s133
    %s134 = sphi 0, %s131
    %s135 = sphi 0, %s134
    %s151 = sphi 0, %s135
  $region4: #{depthwise_separable_conv2d.1} parent=0 // loop_header_branch
    %14 = sbr.rel (%p12) target = $region8
  $region5: #{depthwise_separable_conv2d.1} parent=0 // loop_body
    %s16 = ssub.s32 %s11, 1
    %s17 = ssub.s32 %s11, 2
    %s18 = sadd.s32 %s11, 1
    %s19 = ssub.s32 %s11, %s18
    %p20 = scmp.eq.s32.totalorder %s19, 0
    %s22 = sadd.s32 %s21, 1
    %s23 = scalar_select %p20, %s21, %s22
    %p26 = pneg %p20
    %p27 = scmp.eq.s32.totalorder %s11, 3
    %p28 = por %p26, %p27
    %p29 = scmp.ne.s32.totalorder %s21, %s24
    %p30 = scmp.eq.s32.totalorder %s11, 0
    %p31 = por %p29, %p30
    %p32 = scmp.ne.s32.totalorder %s21, %s24
    %p33 = scmp.eq.s32.totalorder %s16, 3
    %p34 = por %p32, %p33
    %p35 = scmp.ne.s32.totalorder %s24, %s25
    %p36 = scmp.eq.s32.totalorder %s16, 0
    %p37 = por %p35, %p36
    %p38 = scmp.ne.s32.totalorder %s24, %s25
    %p39 = scmp.eq.s32.totalorder %s17, 3
    %p40 = por %p38, %p39
    %p42 = scmp.ne.s32.totalorder %s25, %s41
    %p43 = scmp.eq.s32.totalorder %s17, 0
    %p44 = por %p42, %p43
    %s46 = sadd.s32 %s45, 1
    %p49 = scmp.eq.s32.totalorder %s11, 3
    %p50 = scmp.ne.s32.totalorder %s45, %s47
    %p51 = scmp.eq.s32.totalorder %s11, 0
    %p52 = por %p50, %p51
    %p53 = scmp.ne.s32.totalorder %s45, %s47
    %p54 = scmp.eq.s32.totalorder %s16, 3
    %p55 = por %p53, %p54
    %p56 = scmp.ne.s32.totalorder %s47, %s48
    %p57 = scmp.eq.s32.totalorder %s16, 0
    %p58 = por %p56, %p57
    %p59 = scmp.ne.s32.totalorder %s47, %s48
    %p60 = scmp.eq.s32.totalorder %s17, 3
    %p61 = por %p59, %p60
    %p63 = scmp.ne.s32.totalorder %s48, %s62
    %p64 = scmp.eq.s32.totalorder %s17, 0
    %p65 = por %p63, %p64
    %s67 = sadd.s32 %s66, 1
    %p70 = scmp.eq.s32.totalorder %s11, 3
    %p71 = scmp.ne.s32.totalorder %s66, %s68
    %p72 = scmp.eq.s32.totalorder %s11, 0
    %p73 = por %p71, %p72
    %p74 = scmp.ne.s32.totalorder %s66, %s68
    %p75 = scmp.eq.s32.totalorder %s16, 3
    %p76 = por %p74, %p75
    %p77 = scmp.ne.s32.totalorder %s68, %s69
    %p78 = scmp.eq.s32.totalorder %s16, 0
    %p79 = por %p77, %p78
    %p80 = scmp.ne.s32.totalorder %s68, %s69
    %p81 = scmp.eq.s32.totalorder %s17, 3
    %p82 = por %p80, %p81
    %p84 = scmp.ne.s32.totalorder %s69, %s83
    %p85 = scmp.eq.s32.totalorder %s17, 0
    %p86 = por %p84, %p85
    %s88 = sadd.s32 %s87, 1
    %p91 = scmp.eq.s32.totalorder %s11, 3
    %p92 = scmp.ne.s32.totalorder %s87, %s89
    %p93 = scmp.eq.s32.totalorder %s11, 0
    %p94 = por %p92, %p93
    %p95 = scmp.ne.s32.totalorder %s87, %s89
    %p96 = scmp.eq.s32.totalorder %s16, 3
    %p97 = por %p95, %p96
    %p98 = scmp.ne.s32.totalorder %s89, %s90
    %p99 = scmp.eq.s32.totalorder %s16, 0
    %p100 = por %p98, %p99
    %p101 = scmp.ne.s32.totalorder %s89, %s90
    %p102 = scmp.eq.s32.totalorder %s17, 3
    %p103 = por %p101, %p102
    %p105 = scmp.ne.s32.totalorder %s90, %s104
    %p106 = scmp.eq.s32.totalorder %s17, 0
    %p107 = por %p105, %p106
    %s109 = sadd.s32 %s108, 1
    %p112 = scmp.eq.s32.totalorder %s11, 3
    %p113 = scmp.ne.s32.totalorder %s108, %s110
    %p114 = scmp.eq.s32.totalorder %s11, 0
    %p115 = por %p113, %p114
    %p116 = scmp.ne.s32.totalorder %s108, %s110
    %p117 = scmp.eq.s32.totalorder %s16, 3
    %p118 = por %p116, %p117
    %p119 = scmp.ne.s32.totalorder %s110, %s111
    %p120 = scmp.eq.s32.totalorder %s16, 0
    %p121 = por %p119, %p120
    %p122 = scmp.ne.s32.totalorder %s110, %s111
    %p123 = scmp.eq.s32.totalorder %s17, 3
    %p124 = por %p122, %p123
    %p126 = scmp.ne.s32.totalorder %s111, %s125
    %p127 = scmp.eq.s32.totalorder %s17, 0
    %p128 = por %p126, %p127
    %s129 = ssub.s32 %s11, %s18
    %p130 = scmp.eq.s32.totalorder %s129, 0
    %s132 = sadd.s32 %s131, 1
    %s133 = scalar_select %p130, %s131, %s132
    %p136 = pneg %p130
    %p137 = scmp.eq.s32.totalorder %s11, 3
    %p138 = por %p136, %p137
    %p139 = scmp.ne.s32.totalorder %s131, %s134
    %p140 = scmp.eq.s32.totalorder %s11, 0
    %p141 = por %p139, %p140
    %p142 = scmp.ne.s32.totalorder %s131, %s134
    %p143 = scmp.eq.s32.totalorder %s16, 3
    %p144 = por %p142, %p143
    %p145 = scmp.ne.s32.totalorder %s134, %s135
    %p146 = scmp.eq.s32.totalorder %s16, 0
    %p147 = por %p145, %p146
    %p148 = scmp.ne.s32.totalorder %s134, %s135
    %p149 = scmp.eq.s32.totalorder %s17, 3
    %p150 = por %p148, %p149
    %p152 = scmp.ne.s32.totalorder %s135, %s151
    %p153 = scmp.eq.s32.totalorder %s17, 0
    %p154 = por %p152, %p153
    %p155 = scmp.le.s32.totalorder 1, %s11
    %p156 = scmp.lt.s32.totalorder %s11, 5
    %p157 = pnand %p155, %p156
    %p158 = pneg %p157
    // Predicated region
    $region9: #{depthwise_separable_conv2d.1} parent=5 // pred_check
      _
    $region10: #{depthwise_separable_conv2d.1} parent=5 // pred_check_branch
      %160 = sbr.rel (%p157) target = $region12
    $region11: #{depthwise_separable_conv2d.1} parent=5 // pred_region
      %s161 = ssub.s32 %s11, 1
      // Predicated region
      $region13: #{depthwise_separable_conv2d.1} parent=11 // pred_check
        %p162 = pneg %p58
      $region14: #{depthwise_separable_conv2d.1} parent=11 // pred_check_branch
        %164 = sbr.rel (%p162) target = $region16
      $region15: #{depthwise_separable_conv2d.1} parent=11 // pred_region
        _
      $region16: #{depthwise_separable_conv2d.1} parent=11 // pred_fallthru
        _
      // Predicated region
      $region17: #{depthwise_separable_conv2d.1} parent=11 // pred_check
        %p165 = pneg %p79
      $region18: #{depthwise_separable_conv2d.1} parent=11 // pred_check_branch
        %167 = sbr.rel (%p165) target = $region20
      $region19: #{depthwise_separable_conv2d.1} parent=11 // pred_region
        _
      $region20: #{depthwise_separable_conv2d.1} parent=11 // pred_fallthru
        _
      // Predicated region
      $region21: #{depthwise_separable_conv2d.1} parent=11 // pred_check
        %p168 = pneg %p100
      $region22: #{depthwise_separable_conv2d.1} parent=11 // pred_check_branch
        %170 = sbr.rel (%p168) target = $region24
      $region23: #{depthwise_separable_conv2d.1} parent=11 // pred_region
        _
      $region24: #{depthwise_separable_conv2d.1} parent=11 // pred_fallthru
        _
      // Predicated region
      $region25: #{depthwise_separable_conv2d.1} parent=11 // pred_check
        %p171 = pneg %p121
      $region26: #{depthwise_separable_conv2d.1} parent=11 // pred_check_branch
        %173 = sbr.rel (%p171) target = $region28
      $region27: #{depthwise_separable_conv2d.1} parent=11 // pred_region
        _
      $region28: #{depthwise_separable_conv2d.1} parent=11 // pred_fallthru
        _
    $region12: #{depthwise_separable_conv2d.1} parent=5 // pred_fallthru
      _
    %p174 = scmp.lt.s32.totalorder %s11, 4
    // Predicated region
    $region29: #{depthwise_separable_conv2d.1} parent=5 // pred_check
      %p175 = pneg %p174
    $region30: #{depthwise_separable_conv2d.1} parent=5 // pred_check_branch
      %177 = sbr.rel (%p175) target = $region32
    $region31: #{depthwise_separable_conv2d.1} parent=5 // pred_region
      // Predicated region
      $region33: #{depthwise_separable_conv2d.1} parent=31 // pred_check
        %p178 = pneg %p31
      $region34: #{depthwise_separable_conv2d.1} parent=31 // pred_check_branch
        %180 = sbr.rel (%p178) target = $region36
      $region35: #{depthwise_separable_conv2d.1} parent=31 // pred_region
        %p181 = scmp.lt.s32.totalorder %s11, 3
        %s182 = scalar_select %p181, %s11, 3
        %s183 = smul.addr %s182, 20
        %s184 = smul.addr %s183, 8
        %s185 = scalar_lea.vmem %s0, %s184
      $region36: #{depthwise_separable_conv2d.1} parent=31 // pred_fallthru
        _
    $region32: #{depthwise_separable_conv2d.1} parent=5 // pred_fallthru
      _
    %p186 = scmp.le.s32.totalorder 1, %s11
    %p187 = scmp.lt.s32.totalorder %s11, 5
    %p188 = pnand %p186, %p187
    %p189 = pneg %p188
    // Predicated region
    $region37: #{depthwise_separable_conv2d.1} parent=5 // pred_check
      _
    $region38: #{depthwise_separable_conv2d.1} parent=5 // pred_check_branch
      %191 = sbr.rel (%p188) target = $region40
    $region39: #{depthwise_separable_conv2d.1} parent=5 // pred_region
      %s192 = ssub.s32 %s11, 1
      %p193 = scmp.lt.s32.totalorder %s16, 3
      %s194 = scalar_select %p193, %s16, 3
      %s195 = smul.addr %s194, 20
      %s196 = smul.addr %s195, 8
      %s197 = scalar_lea.vmem %s0, %s196
      %p198 = pneg %p37
      %p199 = pneg %p34
      %p200 = pneg %p58
      %p201 = pneg %p55
      %p202 = pneg %p79
      %p203 = pneg %p76
      %p204 = pneg %p100
      %p205 = pneg %p97
      %p206 = pneg %p121
      %p207 = pneg %p118
      %p208 = pneg %p147
      %p209 = pneg %p144
      %p210 = scmp.lt.s32.totalorder %s16, 3
      %s211 = scalar_select %p210, %s16, 3
      %s212 = smul.addr %s211, 4
      %s213 = smul.addr %s212, 8
      %s214 = scalar_lea.vmem %s5, %s213
      %p215 = scmp.lt.s32.totalorder %s16, 3
      %s216 = scalar_select %p215, %s16, 3
      %s217 = smul.addr %s216, 20
      %s218 = smul.addr %s217, 8
      %s219 = scalar_lea.vmem %s0, %s218
      %p220 = scmp.lt.s32.totalorder %s16, 3
      %s221 = scalar_select %p220, %s16, 3
      %s222 = smul.addr %s221, 4
      %s223 = smul.addr %s222, 8
      %s224 = scalar_lea.vmem %s5, %s223
      %v225 = vld [vmem:[%s1] sm:$0x1]
      %v226 = vld [vmem:[%s1 + $0x1] sm:$0x1]
      %v227 = vld [vmem:[%s1 + $0x2] sm:$0x1]
      %v228 = vld [vmem:[%s1 + $0x3] sm:$0x1]
      %v229 = vld [vmem:[%s1 + $0x4] sm:$0x1]
      %v230 = vld [vmem:[%s1 + $0x5] sm:$0x1]
      %v231 = vld [vmem:[%s1 + $0x6] sm:$0x1]
      %v232 = vld [vmem:[%s1 + $0x7] sm:$0x1]
      %v233 = vld [vmem:[%s1 + $0x8] sm:$0x1]
      %v234 = vld [vmem:[%s219] sm:$0x7f]
      %v235 = vld [vmem:[%s219 + $0x8] sm:$0x7f]
      %v236 = vld [vmem:[%s219 + $0x10] sm:$0x7f]
      %v237 = vld [vmem:[%s219 + $0x18] sm:$0x7f]
      %v239 = vperm.slane %v225, 0
      %v241 = vmul.f32 %v234, %v239
      %v242 = vmul.f32 %v235, %v239
      %v243 = vmul.f32 %v236, %v239
      %v244 = vmul.f32 %v237, %v239
      %s245 = scalar_lea.vmem %s219, 40
      %v246 = vld [vmem:[%s245] sm:$0x7f]
      %v247 = vld [vmem:[%s245 + $0x8] sm:$0x7f]
      %v248 = vld [vmem:[%s245 + $0x10] sm:$0x7f]
      %v249 = vld [vmem:[%s245 + $0x18] sm:$0x7f]
      %v251 = vperm.slane %v226, 0
      %v253 = vmul.f32 %v246, %v251
      %v254 = vmul.f32 %v247, %v251
      %v255 = vmul.f32 %v248, %v251
      %v256 = vmul.f32 %v249, %v251
      %v257 = vadd.f32 %v241, %v253
      %v258 = vadd.f32 %v242, %v254
      %v259 = vadd.f32 %v243, %v255
      %v260 = vadd.f32 %v244, %v256
      %v261 = vld [vmem:[%s219 + $0x1] sm:$0x7f]
      %v262 = vld [vmem:[%s219 + $0x9] sm:$0x7f]
      %v263 = vld [vmem:[%s219 + $0x11] sm:$0x7f]
      %v264 = vld [vmem:[%s219 + $0x19] sm:$0x7f]
      %v266 = vperm.slane %v227, 0
      %v268 = vmul.f32 %v261, %v266
      %v269 = vmul.f32 %v262, %v266
      %v270 = vmul.f32 %v263, %v266
      %v271 = vmul.f32 %v264, %v266
      %v272 = vadd.f32 %v257, %v268
      %v273 = vadd.f32 %v258, %v269
      %v274 = vadd.f32 %v259, %v270
      %v275 = vadd.f32 %v260, %v271
      %s276 = scalar_lea.vmem %s219, 80
      %v277 = vld [vmem:[%s276] sm:$0x7f]
      %v278 = vld [vmem:[%s276 + $0x8] sm:$0x7f]
      %v279 = vld [vmem:[%s276 + $0x10] sm:$0x7f]
      %v280 = vld [vmem:[%s276 + $0x18] sm:$0x7f]
      %v282 = vperm.slane %v228, 0
      %v284 = vmul.f32 %v277, %v282
      %v285 = vmul.f32 %v278, %v282
      %v286 = vmul.f32 %v279, %v282
      %v287 = vmul.f32 %v280, %v282
      %v288 = vadd.f32 %v272, %v284
      %v289 = vadd.f32 %v273, %v285
      %v290 = vadd.f32 %v274, %v286
      %v291 = vadd.f32 %v275, %v287
      %s292 = scalar_lea.vmem %s219, 120
      %v293 = vld [vmem:[%s292] sm:$0x7f]
      %v294 = vld [vmem:[%s292 + $0x8] sm:$0x7f]
      %v295 = vld [vmem:[%s292 + $0x10] sm:$0x7f]
      %v296 = vld [vmem:[%s292 + $0x18] sm:$0x7f]
      %v298 = vperm.slane %v229, 0
      %v300 = vmul.f32 %v293, %v298
      %v301 = vmul.f32 %v294, %v298
      %v302 = vmul.f32 %v295, %v298
      %v303 = vmul.f32 %v296, %v298
      %v304 = vadd.f32 %v288, %v300
      %v305 = vadd.f32 %v289, %v301
      %v306 = vadd.f32 %v290, %v302
      %v307 = vadd.f32 %v291, %v303
      %v308 = vld [vmem:[%s276 + $0x1] sm:$0x7f]
      %v309 = vld [vmem:[%s276 + $0x9] sm:$0x7f]
      %v310 = vld [vmem:[%s276 + $0x11] sm:$0x7f]
      %v311 = vld [vmem:[%s276 + $0x19] sm:$0x7f]
      %v313 = vperm.slane %v230, 0
      %v315 = vmul.f32 %v308, %v313
      %v316 = vmul.f32 %v309, %v313
      %v317 = vmul.f32 %v310, %v313
      %v318 = vmul.f32 %v311, %v313
      %v319 = vadd.f32 %v304, %v315
      %v320 = vadd.f32 %v305, %v316
      %v321 = vadd.f32 %v306, %v317
      %v322 = vadd.f32 %v307, %v318
      %s323 = scalar_lea.vmem %s219, 8
      %v324 = vld [vmem:[%s323] sm:$0x7f]
      %v325 = vld [vmem:[%s323 + $0x8] sm:$0x7f]
      %v326 = vld [vmem:[%s323 + $0x10] sm:$0x7f]
      %v327 = vld [vmem:[%s323 + $0x18] sm:$0x7f]
      %v329 = vperm.slane %v231, 0
      %v331 = vmul.f32 %v324, %v329
      %v332 = vmul.f32 %v325, %v329
      %v333 = vmul.f32 %v326, %v329
      %v334 = vmul.f32 %v327, %v329
      %v335 = vadd.f32 %v319, %v331
      %v336 = vadd.f32 %v320, %v332
      %v337 = vadd.f32 %v321, %v333
      %v338 = vadd.f32 %v322, %v334
      %s339 = scalar_lea.vmem %s219, 48
      %v340 = vld [vmem:[%s339] sm:$0x7f]
      %v341 = vld [vmem:[%s339 + $0x8] sm:$0x7f]
      %v342 = vld [vmem:[%s339 + $0x10] sm:$0x7f]
      %v343 = vld [vmem:[%s339 + $0x18] sm:$0x7f]
      %v345 = vperm.slane %v232, 0
      %v347 = vmul.f32 %v340, %v345
      %v348 = vmul.f32 %v341, %v345
      %v349 = vmul.f32 %v342, %v345
      %v350 = vmul.f32 %v343, %v345
      %v351 = vadd.f32 %v335, %v347
      %v352 = vadd.f32 %v336, %v348
      %v353 = vadd.f32 %v337, %v349
      %v354 = vadd.f32 %v338, %v350
      %v355 = vld [vmem:[%s323 + $0x1] sm:$0x7f]
      %v356 = vld [vmem:[%s323 + $0x9] sm:$0x7f]
      %v357 = vld [vmem:[%s323 + $0x11] sm:$0x7f]
      %v358 = vld [vmem:[%s323 + $0x19] sm:$0x7f]
      %v360 = vperm.slane %v233, 0
      %v362 = vmul.f32 %v355, %v360
      %v363 = vmul.f32 %v356, %v360
      %v364 = vmul.f32 %v357, %v360
      %v365 = vmul.f32 %v358, %v360
      %v366 = vadd.f32 %v351, %v362
      %v367 = vadd.f32 %v352, %v363
      %v368 = vadd.f32 %v353, %v364
      %v369 = vadd.f32 %v354, %v365
      %v370 = vld [vmem:[%s2] sm:$0x1]
      %v372 = vperm.slane %v370, 0
      %v374 = vadd.f32 %v366, %v372
      %v375 = vadd.f32 %v367, %v372
      %v376 = vadd.f32 %v368, %v372
      %v377 = vadd.f32 %v369, %v372
      %v378 = vmax.f32 %v374, 0.0
      %v379 = vmax.f32 %v375, 0.0
      %v380 = vmax.f32 %v376, 0.0
      %v381 = vmax.f32 %v377, 0.0
      %382 = vst [vmem:[#allocation2] sm:$0x7f] %v378
      %383 = vst [vmem:[#allocation2 + $0x7] sm:$0x7f] %v379
      %384 = vst [vmem:[#allocation2 + $0xe] sm:$0x7f] %v380
      %385 = vst [vmem:[#allocation2 + $0x15] sm:$0x7f] %v381
      %v386 = vld [vmem:[#allocation2] sm:$0xff]
      %v387 = vld [vmem:[#allocation2 + $0x8] sm:$0xff]
      %v388 = vld [vmem:[#allocation2 + $0x10] sm:$0xff]
      %v389 = vld [vmem:[#allocation2 + $0x18] sm:$0xf]
      %v390 = vld [vmem:[%s3] sm:$0xff]
      %v391 = vld [vmem:[%s3 + $0x8] sm:$0xff]
      %v392 = vld [vmem:[%s3 + $0x10] sm:$0xff]
      %v393 = vld [vmem:[%s3 + $0x18] sm:$0xff]
      %v394 = vld [vmem:[%s3 + $0x20] sm:$0xff]
      %v395 = vld [vmem:[%s3 + $0x28] sm:$0xff]
      %v396 = vld [vmem:[%s3 + $0x30] sm:$0xff]
      %v397 = vld [vmem:[%s3 + $0x38] sm:$0xff]
      %v398 = vld [vmem:[%s3 + $0x40] sm:$0xff]
      %v399 = vld [vmem:[%s3 + $0x48] sm:$0xff]
      %v400 = vld [vmem:[%s3 + $0x50] sm:$0xff]
      %v401 = vld [vmem:[%s3 + $0x58] sm:$0xff]
      %v402 = vld [vmem:[%s3 + $0x60] sm:$0xff]
      %v403 = vld [vmem:[%s3 + $0x68] sm:$0xff]
      %v404 = vld [vmem:[%s3 + $0x70] sm:$0xff]
      %v405 = vld [vmem:[%s3 + $0x78] sm:$0xff]
      %v406 = vld [vmem:[%s4] sm:$0x1]
      %v408 = vperm.slane %v406, 0
      %410 = vmatpush.msra.mxu0 %v405
      %411 = vmatpush.msra.mxu0 %v404
      %412 = vmatpush.msra.mxu0 %v403
      %413 = vmatpush.msra.mxu0 %v402
      %414 = vmatpush.msra.mxu0 %v401
      %415 = vmatpush.msra.mxu0 %v400
      %416 = vmatpush.msra.mxu0 %v399
      %417 = vmatpush.msra.mxu0 %v398
      %418 = vmatpush.msra.mxu0 %v397
      %419 = vmatpush.msra.mxu0 %v396
      %420 = vmatpush.msra.mxu0 %v395
      %421 = vmatpush.msra.mxu0 %v394
      %422 = vmatpush.msra.mxu0 %v393
      %423 = vmatpush.msra.mxu0 %v392
      %424 = vmatpush.msra.mxu0 %v391
      %425 = vmatpush.msra.mxu0 %v390
      %426 = vmatmul.f32.gmra.mxu0 %v386
      %v427 = vpop.f32.mrf.mxu0
      %v428 = vadd.f32 %v408, %v427
      %429 = vmatmul.f32.gmra.mxu0 %v387
      %v430 = vpop.f32.mrf.mxu0
      %v431 = vadd.f32 %v408, %v430
      %432 = vmatmul.f32.gmra.mxu0 %v388
      %v433 = vpop.f32.mrf.mxu0
      %v434 = vadd.f32 %v408, %v433
      %435 = vmatmul.f32.gmra.mxu0 %v389
      %v436 = vpop.f32.mrf.mxu0
      %v437 = vadd.f32 %v408, %v436
      %438 = vdwg.mxu0
      %v439 = vmax.f32 %v428, 0.0
      %v440 = vmax.f32 %v431, 0.0
      %v441 = vmax.f32 %v434, 0.0
      %v442 = vmax.f32 %v437, 0.0
      %443 = vst [vmem:[%s224] sm:$0xff] %v439
      %444 = vst [vmem:[%s224 + $0x8] sm:$0xff] %v440
      %445 = vst [vmem:[%s224 + $0x10] sm:$0xff] %v441
      %446 = vst [vmem:[%s224 + $0x18] sm:$0xf] %v442
      %p447 = scmp.lt.s32.totalorder %s16, 3
      %s448 = scalar_select %p447, %s16, 3
      %s449 = smul.addr %s448, 4
      %s450 = smul.addr %s449, 8
      %s451 = scalar_lea.vmem %s5, %s450
      // Predicated region
      $region41: #{depthwise_separable_conv2d.1} parent=39 // pred_check
        %p452 = pneg %p144
      $region42: #{depthwise_separable_conv2d.1} parent=39 // pred_check_branch
        %454 = sbr.rel (%p452) target = $region44
      $region43: #{depthwise_separable_conv2d.1} parent=39 // pred_region
        _
      $region44: #{depthwise_separable_conv2d.1} parent=39 // pred_fallthru
        _
    $region40: #{depthwise_separable_conv2d.1} parent=5 // pred_fallthru
      _
    %p455 = scmp.le.s32.totalorder 2, %s11
    // Predicated region
    $region45: #{depthwise_separable_conv2d.1} parent=5 // pred_check
      %p456 = pneg %p455
    $region46: #{depthwise_separable_conv2d.1} parent=5 // pred_check_branch
      %458 = sbr.rel (%p456) target = $region48
    $region47: #{depthwise_separable_conv2d.1} parent=5 // pred_region
      %s459 = ssub.s32 %s11, 2
      // Predicated region
      $region49: #{depthwise_separable_conv2d.1} parent=47 // pred_check
        %p460 = pneg %p150
      $region50: #{depthwise_separable_conv2d.1} parent=47 // pred_check_branch
        %462 = sbr.rel (%p460) target = $region52
      $region51: #{depthwise_separable_conv2d.1} parent=47 // pred_region
        %p463 = scmp.lt.s32.totalorder %s17, 3
        %s464 = scalar_select %p463, %s17, 3
        %s465 = smul.addr %s464, 4
        %s466 = smul.addr %s465, 8
        %s467 = scalar_lea.vmem %s5, %s466
      $region52: #{depthwise_separable_conv2d.1} parent=47 // pred_fallthru
        _
    $region48: #{depthwise_separable_conv2d.1} parent=5 // pred_fallthru
      _
  $region6: #{depthwise_separable_conv2d.1} parent=0 // loop_footer
    %s15 = sadd.s32 1, %s11
  $region7: #{depthwise_separable_conv2d.1} parent=0 // loop_footer_branch
    %10 = sbr.rel target = $region3
  $region8: #{depthwise_separable_conv2d.1} parent=0 // loop_exit
    _

</llo_original>
